<compile_context>
chip_gen: v7x
topology: tpu7x:2x2x1
jax: 0.10.0
libtpu: 0.0.40
codegen_flags: <defaults>
</compile_context>

<pallas_src>
import functools

import jax
import jax.numpy as jnp
import numpy as np
from jax.experimental import pallas as pl
from jax.experimental.pallas import tpu as pltpu


A_PAD = 128   # action features padded to one full lane width (lane-dense stores)


def _round_up(x, m):
    return (x + m - 1) // m * m


def actor_q_kernel(x_ref, w1_ref, b1_ref, w2_ref, b2_ref,
                   w3_ref, b3_ref, w4_ref, b4_ref, out_ref):
    # fc_1 + ReLU   (f32 x f32, K = state_size; f32 accumulate on the MXU)
    h = jnp.dot(x_ref[...], w1_ref[...], preferred_element_type=jnp.float32)
    h = jnp.maximum(h + b1_ref[...], 0.0).astype(jnp.bfloat16)
    # fc_2 + ReLU   (bf16 operands, f32 accumulate)
    h = jnp.dot(h, w2_ref[...], preferred_element_type=jnp.float32)
    h = jnp.maximum(h + b2_ref[...], 0.0).astype(jnp.bfloat16)
    # fc_3 + ReLU
    h = jnp.dot(h, w3_ref[...], preferred_element_type=jnp.float32)
    h = jnp.maximum(h + b3_ref[...], 0.0).astype(jnp.bfloat16)
    # output + tanh (EUP), store bf16 lane-dense
    y = jnp.dot(h, w4_ref[...], preferred_element_type=jnp.float32)
    out_ref[...] = jnp.tanh(y + b4_ref[...]).astype(out_ref.dtype)


def prepare_params(raw_params, state_size, action_size):
    """Cast layers 2-4 weights to bf16; lane-pad the output layer to A_PAD.

    Layer-1 weights stay f32 and unpadded (K = state_size); zero-padded output
    columns of w4/b4 produce tanh(0)=0 in the padded lanes, which are sliced
    away in the wrapper.
    """
    w1, b1, w2, b2, w3, b3, w4, b4 = raw_params
    h2 = w4.shape[0]
    w4p = jnp.zeros((h2, A_PAD), jnp.float32).at[:, :action_size].set(w4)
    b4p = jnp.zeros((1, A_PAD), jnp.float32).at[:, :action_size].set(b4)
    return (w1.astype(jnp.float32), b1.astype(jnp.float32),
            w2.astype(jnp.bfloat16), b2.astype(jnp.float32),
            w3.astype(jnp.bfloat16), b3.astype(jnp.float32),
            w4p.astype(jnp.bfloat16), b4p)


@functools.partial(jax.jit, static_argnames=("action_size", "tile_b"))
def actor_q_forward(x, padded_params, action_size, tile_b=1024):
    """x: [B, state_size] f32 -> [B, action_size] f32."""
    w1, b1, w2, b2, w3, b3, w4, b4 = padded_params
    B, S = x.shape

    # Batch tile: as large as possible (step-overhead bound otherwise), but keep
    # >=2 grid steps for big batches so v7x megacore can split the work.
    tb = min(tile_b, _round_up(max(B, 8), 8))
    if B > 256:
        tb = min(tb, _round_up(pl.cdiv(B, 2), 8))
    grid = (pl.cdiv(B, tb),)

    const = lambda i: (0, 0)   # weights/biases: same block every step -> VMEM-resident
    out = pl.pallas_call(
        actor_q_kernel,
        out_shape=jax.ShapeDtypeStruct((B, A_PAD), jnp.bfloat16),
        grid_spec=pltpu.PrefetchScalarGridSpec(
            num_scalar_prefetch=0,
            grid=grid,
            in_specs=[
                pl.BlockSpec((tb, S), lambda i: (i, 0)),   # x tile (unpadded f32)
                pl.BlockSpec(w1.shape, const),
                pl.BlockSpec(b1.shape, const),
                pl.BlockSpec(w2.shape, const),
                pl.BlockSpec(b2.shape, const),
                pl.BlockSpec(w3.shape, const),
                pl.BlockSpec(b3.shape, const),
                pl.BlockSpec(w4.shape, const),
                pl.BlockSpec(b4.shape, const),
            ],
            out_specs=pl.BlockSpec((tb, A_PAD), lambda i: (i, 0)),
        ),
        compiler_params=pltpu.CompilerParams(
            dimension_semantics=("parallel",),   # batch tiles are independent
        ),
    )(x, w1, b1, w2, b2, w3, b3, w4, b4)

    # Slice away padded lanes (could instead be returned padded and fused into
    # the consumer to avoid this extra pass).
    return out[:, :action_size].astype(jnp.float32)


def init_params(key, state_size, action_size, h1=256, h2=128):
    """Replicates the PyTorch module's init ranges (W stored as weight.T).

    hidden_init quirk: lim = 1/sqrt(weight.size(0)) = 1/sqrt(out_features).
    Biases keep nn.Linear default: uniform(-1/sqrt(in_features), +...).
    """
    ks = jax.random.split(key, 8)

    def u(k, shape, lim):
        return jax.random.uniform(k, shape, jnp.float32, -lim, lim)

    w1 = u(ks[0], (state_size, h1), 1.0 / np.sqrt(h1))
    b1 = u(ks[1], (1, h1), 1.0 / np.sqrt(state_size))
    w2 = u(ks[2], (h1, h1), 1.0 / np.sqrt(h1))
    b2 = u(ks[3], (1, h1), 1.0 / np.sqrt(h1))
    w3 = u(ks[4], (h1, h2), 1.0 / np.sqrt(h2))
    b3 = u(ks[5], (1, h2), 1.0 / np.sqrt(h1))
    w4 = u(ks[6], (h2, action_size), 0.003)
    b4 = u(ks[7], (1, action_size), 1.0 / np.sqrt(h2))
    return (w1, b1, w2, b2, w3, b3, w4, b4)


def reference_forward(x, raw_params):
    w1, b1, w2, b2, w3, b3, w4, b4 = raw_params
    h = jnp.maximum(x @ w1 + b1, 0.0)
    h = jnp.maximum(h @ w2 + b2, 0.0)
    h = jnp.maximum(h @ w3 + b3, 0.0)
    return jnp.tanh(h @ w4 + b4)


if __name__ == "__main__":
    key = jax.random.PRNGKey(0)
    k_x, k_x2, k_p = jax.random.split(key, 3)

    state_size, action_size = 33, 4
    raw_params = init_params(k_p, state_size, action_size)
    padded_params = prepare_params(raw_params, state_size, action_size)

    # Small single-tile case (batch=8, matches the module's typical RL usage).
    x = jax.random.normal(k_x, (8, state_size), dtype=jnp.float32)
    out = actor_q_forward(x, padded_params, action_size)
    out = jax.block_until_ready(out)
    ref = reference_forward(x, raw_params)
    np.testing.assert_allclose(np.asarray(out), np.asarray(ref),
                               rtol=2e-2, atol=2e-2)
    assert out.shape == (8, action_size)

    # Multi-tile batch-grid case with a ragged last block (exercises masked
    # writes + VMEM-resident weights across grid steps).
    x2 = jax.random.normal(k_x2, (300, state_size), dtype=jnp.float32)
    out2 = actor_q_forward(x2, padded_params, action_size, tile_b=128)
    out2 = jax.block_until_ready(out2)
    ref2 = reference_forward(x2, raw_params)
    np.testing.assert_allclose(np.asarray(out2), np.asarray(ref2),
                               rtol=2e-2, atol=2e-2)
    assert out2.shape == (300, action_size)

    print("KERNEL_OK")
</pallas_src>

<mosaic_0001>
module attributes {stable_mosaic.version = 11 : i64} {
  func.func @actor_q_kernel(%arg0: i32, %arg1: memref<8x33xf32, #tpu.memory_space<vmem>>, %arg2: memref<33x256xf32, #tpu.memory_space<vmem>>, %arg3: memref<1x256xf32, #tpu.memory_space<vmem>>, %arg4: memref<256x256xbf16, #tpu.memory_space<vmem>>, %arg5: memref<1x256xf32, #tpu.memory_space<vmem>>, %arg6: memref<256x128xbf16, #tpu.memory_space<vmem>>, %arg7: memref<1x128xf32, #tpu.memory_space<vmem>>, %arg8: memref<128x128xbf16, #tpu.memory_space<vmem>>, %arg9: memref<1x128xf32, #tpu.memory_space<vmem>>, %arg10: memref<8x128xbf16, #tpu.memory_space<vmem>>) attributes {dimension_semantics = [#tpu.dimension_semantics<parallel>], iteration_bounds = array<i64: 1>, scalar_prefetch = 0 : i64, scratch_operands = 0 : i64, tpu.core_type = #tpu.core_type<tc>, window_params = [{transform_indices = @transform_0, window_bounds = array<i64: 8, 33>}, {pipeline_mode = #tpu.pipeline_mode<synchronous>, transform_indices = @transform_1, window_bounds = array<i64: 33, 256>}, {pipeline_mode = #tpu.pipeline_mode<synchronous>, transform_indices = @transform_2, window_bounds = array<i64: 1, 256>}, {pipeline_mode = #tpu.pipeline_mode<synchronous>, transform_indices = @transform_3, window_bounds = array<i64: 256, 256>}, {pipeline_mode = #tpu.pipeline_mode<synchronous>, transform_indices = @transform_4, window_bounds = array<i64: 1, 256>}, {pipeline_mode = #tpu.pipeline_mode<synchronous>, transform_indices = @transform_5, window_bounds = array<i64: 256, 128>}, {pipeline_mode = #tpu.pipeline_mode<synchronous>, transform_indices = @transform_6, window_bounds = array<i64: 1, 128>}, {pipeline_mode = #tpu.pipeline_mode<synchronous>, transform_indices = @transform_7, window_bounds = array<i64: 128, 128>}, {pipeline_mode = #tpu.pipeline_mode<synchronous>, transform_indices = @transform_8, window_bounds = array<i64: 1, 128>}, {transform_indices = @transform_9, window_bounds = array<i64: 8, 128>}]} {
    %c0 = arith.constant 0 : index
    %c0_0 = arith.constant 0 : index
    %0 = vector.load %arg1[%c0, %c0_0] : memref<8x33xf32, #tpu.memory_space<vmem>>, vector<8x33xf32>
    %c0_1 = arith.constant 0 : index
    %c0_2 = arith.constant 0 : index
    %1 = vector.load %arg2[%c0_1, %c0_2] : memref<33x256xf32, #tpu.memory_space<vmem>>, vector<33x256xf32>
    %cst = arith.constant dense<0.000000e+00> : vector<8x256xf32>
    %2 = tpu.matmul %0, %1, %cst {dimension_numbers = #tpu.dot_dimension_numbers<[1], [0], [0], [1], [0, 0, 1, 1], [], []>} : vector<8x33xf32>, vector<33x256xf32>, vector<8x256xf32> -> vector<8x256xf32>
    %c0_3 = arith.constant 0 : index
    %c0_4 = arith.constant 0 : index
    %3 = vector.load %arg3[%c0_3, %c0_4] : memref<1x256xf32, #tpu.memory_space<vmem>>, vector<1x256xf32>
    %4 = vector.broadcast %3 : vector<1x256xf32> to vector<8x256xf32>
    %5 = arith.addf %2, %4 : vector<8x256xf32>
    %cst_5 = arith.constant 0.000000e+00 : f32
    %6 = vector.broadcast %cst_5 : f32 to vector<8x256xf32>
    %7 = arith.maximumf %5, %6 : vector<8x256xf32>
    %8 = arith.truncf %7 : vector<8x256xf32> to vector<8x256xbf16>
    %c0_6 = arith.constant 0 : index
    %c0_7 = arith.constant 0 : index
    %9 = vector.load %arg4[%c0_6, %c0_7] : memref<256x256xbf16, #tpu.memory_space<vmem>>, vector<256x256xbf16>
    %cst_8 = arith.constant dense<0.000000e+00> : vector<8x256xf32>
    %10 = tpu.matmul %8, %9, %cst_8 {dimension_numbers = #tpu.dot_dimension_numbers<[1], [0], [0], [1], [0, 0, 1, 1], [], []>} : vector<8x256xbf16>, vector<256x256xbf16>, vector<8x256xf32> -> vector<8x256xf32>
    %c0_9 = arith.constant 0 : index
    %c0_10 = arith.constant 0 : index
    %11 = vector.load %arg5[%c0_9, %c0_10] : memref<1x256xf32, #tpu.memory_space<vmem>>, vector<1x256xf32>
    %12 = vector.broadcast %11 : vector<1x256xf32> to vector<8x256xf32>
    %13 = arith.addf %10, %12 : vector<8x256xf32>
    %cst_11 = arith.constant 0.000000e+00 : f32
    %14 = vector.broadcast %cst_11 : f32 to vector<8x256xf32>
    %15 = arith.maximumf %13, %14 : vector<8x256xf32>
    %16 = arith.truncf %15 : vector<8x256xf32> to vector<8x256xbf16>
    %c0_12 = arith.constant 0 : index
    %c0_13 = arith.constant 0 : index
    %17 = vector.load %arg6[%c0_12, %c0_13] : memref<256x128xbf16, #tpu.memory_space<vmem>>, vector<256x128xbf16>
    %cst_14 = arith.constant dense<0.000000e+00> : vector<8x128xf32>
    %18 = tpu.matmul %16, %17, %cst_14 {dimension_numbers = #tpu.dot_dimension_numbers<[1], [0], [0], [1], [0, 0, 1, 1], [], []>} : vector<8x256xbf16>, vector<256x128xbf16>, vector<8x128xf32> -> vector<8x128xf32>
    %c0_15 = arith.constant 0 : index
    %c0_16 = arith.constant 0 : index
    %19 = vector.load %arg7[%c0_15, %c0_16] : memref<1x128xf32, #tpu.memory_space<vmem>>, vector<1x128xf32>
    %20 = vector.broadcast %19 : vector<1x128xf32> to vector<8x128xf32>
    %21 = arith.addf %18, %20 : vector<8x128xf32>
    %cst_17 = arith.constant 0.000000e+00 : f32
    %22 = vector.broadcast %cst_17 : f32 to vector<8x128xf32>
    %23 = arith.maximumf %21, %22 : vector<8x128xf32>
    %24 = arith.truncf %23 : vector<8x128xf32> to vector<8x128xbf16>
    %c0_18 = arith.constant 0 : index
    %c0_19 = arith.constant 0 : index
    %25 = vector.load %arg8[%c0_18, %c0_19] : memref<128x128xbf16, #tpu.memory_space<vmem>>, vector<128x128xbf16>
    %cst_20 = arith.constant dense<0.000000e+00> : vector<8x128xf32>
    %26 = tpu.matmul %24, %25, %cst_20 {dimension_numbers = #tpu.dot_dimension_numbers<[1], [0], [0], [1], [0, 0, 1, 1], [], []>} : vector<8x128xbf16>, vector<128x128xbf16>, vector<8x128xf32> -> vector<8x128xf32>
    %c0_21 = arith.constant 0 : index
    %c0_22 = arith.constant 0 : index
    %27 = vector.load %arg9[%c0_21, %c0_22] : memref<1x128xf32, #tpu.memory_space<vmem>>, vector<1x128xf32>
    %28 = vector.broadcast %27 : vector<1x128xf32> to vector<8x128xf32>
    %29 = arith.addf %26, %28 : vector<8x128xf32>
    %30 = math.tanh %29 : vector<8x128xf32>
    %31 = arith.truncf %30 : vector<8x128xf32> to vector<8x128xbf16>
    %c0_23 = arith.constant 0 : index
    %c0_24 = arith.constant 0 : index
    %32 = vector.load %arg10[%c0_23, %c0_24] : memref<8x128xbf16, #tpu.memory_space<vmem>>, vector<8x128xbf16>
    tpu.vector_store %arg10[%c0_23, %c0_24], %31 {strides = array<i32>} : memref<8x128xbf16, #tpu.memory_space<vmem>>, vector<8x128xbf16>,
    return
  }
  func.func @transform_0(%arg0: i32) -> (i32, i32) {
    %c0_i32 = arith.constant 0 : i32
    %c0_i32_0 = arith.constant 0 : i32
    return %arg0, %c0_i32 : i32, i32
  }
  func.func @transform_1(%arg0: i32) -> (i32, i32) {
    %c0_i32 = arith.constant 0 : i32
    %c0_i32_0 = arith.constant 0 : i32
    %c0_i32_1 = arith.constant 0 : i32
    return %c0_i32, %c0_i32_0 : i32, i32
  }
  func.func @transform_2(%arg0: i32) -> (i32, i32) {
    %c0_i32 = arith.constant 0 : i32
    %c0_i32_0 = arith.constant 0 : i32
    %c0_i32_1 = arith.constant 0 : i32
    return %c0_i32, %c0_i32_0 : i32, i32
  }
  func.func @transform_3(%arg0: i32) -> (i32, i32) {
    %c0_i32 = arith.constant 0 : i32
    %c0_i32_0 = arith.constant 0 : i32
    %c0_i32_1 = arith.constant 0 : i32
    return %c0_i32, %c0_i32_0 : i32, i32
  }
  func.func @transform_4(%arg0: i32) -> (i32, i32) {
    %c0_i32 = arith.constant 0 : i32
    %c0_i32_0 = arith.constant 0 : i32
    %c0_i32_1 = arith.constant 0 : i32
    return %c0_i32, %c0_i32_0 : i32, i32
  }
  func.func @transform_5(%arg0: i32) -> (i32, i32) {
    %c0_i32 = arith.constant 0 : i32
    %c0_i32_0 = arith.constant 0 : i32
    %c0_i32_1 = arith.constant 0 : i32
    return %c0_i32, %c0_i32_0 : i32, i32
  }
  func.func @transform_6(%arg0: i32) -> (i32, i32) {
    %c0_i32 = arith.constant 0 : i32
    %c0_i32_0 = arith.constant 0 : i32
    %c0_i32_1 = arith.constant 0 : i32
    return %c0_i32, %c0_i32_0 : i32, i32
  }
  func.func @transform_7(%arg0: i32) -> (i32, i32) {
    %c0_i32 = arith.constant 0 : i32
    %c0_i32_0 = arith.constant 0 : i32
    %c0_i32_1 = arith.constant 0 : i32
    return %c0_i32, %c0_i32_0 : i32, i32
  }
  func.func @transform_8(%arg0: i32) -> (i32, i32) {
    %c0_i32 = arith.constant 0 : i32
    %c0_i32_0 = arith.constant 0 : i32
    %c0_i32_1 = arith.constant 0 : i32
    return %c0_i32, %c0_i32_0 : i32, i32
  }
  func.func @transform_9(%arg0: i32) -> (i32, i32) {
    %c0_i32 = arith.constant 0 : i32
    %c0_i32_0 = arith.constant 0 : i32
    return %arg0, %c0_i32 : i32, i32
  }
}

</mosaic_0001>

<llo_original>
// kernel: actor_q_forward.1
$region0: #{actor_q_forward.1}
  #allocation0 [shape = 'u32[]', space=smem, size = 0x4, offset = 0x4, fixed_abs, tag = 'smem constant byte address 0x4 - core index']
  #allocation1 [shape = 'u32[144,128]{1,0:T(1,128)}', space=vmem, size = 0x12000, scoped, tag = 'internal scratch']
  %s0 = inlined_call_operand.hbm [shape: f32[8,33], index: 0, kind: input, shape index: {}]
  %s1 = inlined_call_operand.hbm [shape: f32[33,256], index: 1, kind: input, shape index: {}]
  %s2 = inlined_call_operand.vmem [shape: f32[1,256], index: 2, kind: input, shape index: {}]
  %s3 = inlined_call_operand.hbm [shape: bf16[256,256], index: 3, kind: input, shape index: {}]
  %s4 = inlined_call_operand.vmem [shape: f32[1,256], index: 4, kind: input, shape index: {}]
  %s5 = inlined_call_operand.hbm [shape: bf16[256,128], index: 5, kind: input, shape index: {}]
  %s6 = inlined_call_operand.vmem [shape: f32[1,128], index: 6, kind: input, shape index: {}]
  %s7 = inlined_call_operand.hbm [shape: bf16[128,128], index: 7, kind: input, shape index: {}]
  %s8 = inlined_call_operand.vmem [shape: f32[1,128], index: 8, kind: input, shape index: {}]
  %s9 = inlined_call_operand.vmem [shape: bf16[8,128], index: 9, kind: output, shape index: {}]
  %s10 = sld [smem:[#allocation0]]
  $region66: #{actor_q_forward.1} parent=0
    _
  %s12 = ssub.s32 1, %s10
  %s13 = scalar_select 0, %s12, %s10
  $region1: #{actor_q_forward.1} parent=0
    #allocation2 [shape = 'u8[4096]{0}', space=vmem, size = 0x1000, scoped, tag = 'input window, operand 0, single buffered']
    #allocation3 [shape = 's32[1]{0}', space=sflag, size = 0x4, scoped, tag = 'scoped memory for actor_q_forward.1']
    #allocation4 [shape = 'u8[40960]{0}', space=vmem, size = 0xa000, scoped, tag = 'input window, operand 1, single buffered']
    #allocation5 [shape = 's32[1]{0}', space=sflag, size = 0x4, scoped, tag = 'scoped memory for actor_q_forward.1']
    #allocation6 [shape = 'u8[131072]{0}', space=vmem, size = 0x20000, scoped, tag = 'input window, operand 3, single buffered']
    #allocation7 [shape = 'u8[65536]{0}', space=vmem, size = 0x10000, scoped, tag = 'input window, operand 5, single buffered']
    #allocation8 [shape = 's32[1]{0}', space=sflag, size = 0x4, scoped, tag = 'scoped memory for actor_q_forward.1']
    #allocation9 [shape = 'u8[32768]{0}', space=vmem, size = 0x8000, scoped, tag = 'input window, operand 7, single buffered']
    %14 = vsyncpa [#allocation3], 0
    %15 = vsyncpa [#allocation5], 0
    %16 = vsyncpa [#allocation8], 0
    // Predicated region
    $region2: #{actor_q_forward.1} parent=1 // pred_check
      _
    $region3: #{actor_q_forward.1} parent=1 // pred_check_branch
      %18 = sbr.rel (0) target = $region5
    $region4: #{actor_q_forward.1} parent=1 // pred_region
      %s20 = ssub.s32 128, 128
      %21 = vsyncadd [#allocation3], %s20
      %s23 = sshll.u32 [#allocation2], 4
      %s24 = int_to_ptr.vmem [resolvable:$true] %s23
      %26 = dma.hbm_to_vmem [thread:$0]  %s0, 128, %s24, [#allocation3]
    $region5: #{actor_q_forward.1} parent=1 // pred_fallthru
      _
    // Predicated region
    $region6: #{actor_q_forward.1} parent=1 // pred_check
      _
    $region7: #{actor_q_forward.1} parent=1 // pred_check_branch
      %28 = sbr.rel (0) target = $region9
    $region8: #{actor_q_forward.1} parent=1 // pred_region
      %s30 = ssub.s32 1280, 1280
      %31 = vsyncadd [#allocation5], %s30
      %s32 = sshll.u32 [#allocation4], 4
      %s33 = int_to_ptr.vmem [resolvable:$true] %s32
      %38 = dma.hbm_to_vmem [thread:$0]  %s1, 1280, %s33, [#allocation5], 256, 256, 16
    $region9: #{actor_q_forward.1} parent=1 // pred_fallthru
      _
    // Predicated region
    $region10: #{actor_q_forward.1} parent=1 // pred_check
      _
    $region11: #{actor_q_forward.1} parent=1 // pred_check_branch
      %40 = sbr.rel (0) target = $region13
    $region12: #{actor_q_forward.1} parent=1 // pred_region
      _
    $region13: #{actor_q_forward.1} parent=1 // pred_fallthru
      _
    // Predicated region
    $region14: #{actor_q_forward.1} parent=1 // pred_check
      _
    $region15: #{actor_q_forward.1} parent=1 // pred_check_branch
      %42 = sbr.rel (0) target = $region17
    $region16: #{actor_q_forward.1} parent=1 // pred_region
      %s44 = ssub.s32 4096, 4096
      %45 = vsyncadd [#allocation5], %s44
      %s46 = sshll.u32 [#allocation6], 4
      %s47 = int_to_ptr.vmem [resolvable:$true] %s46
      %52 = dma.hbm_to_vmem [thread:$0]  %s3, 4096, %s47, [#allocation5], 128, 128, 8
    $region17: #{actor_q_forward.1} parent=1 // pred_fallthru
      _
    // Predicated region
    $region18: #{actor_q_forward.1} parent=1 // pred_check
      _
    $region19: #{actor_q_forward.1} parent=1 // pred_check_branch
      %54 = sbr.rel (0) target = $region21
    $region20: #{actor_q_forward.1} parent=1 // pred_region
      _
    $region21: #{actor_q_forward.1} parent=1 // pred_fallthru
      _
    // Predicated region
    $region22: #{actor_q_forward.1} parent=1 // pred_check
      _
    $region23: #{actor_q_forward.1} parent=1 // pred_check_branch
      %56 = sbr.rel (0) target = $region25
    $region24: #{actor_q_forward.1} parent=1 // pred_region
      %s58 = ssub.s32 2048, 2048
      %59 = vsyncadd [#allocation8], %s58
      %s60 = sshll.u32 [#allocation7], 4
      %s61 = int_to_ptr.vmem [resolvable:$true] %s60
      %66 = dma.hbm_to_vmem [thread:$0]  %s5, 2048, %s61, [#allocation8], 64, 64, 4
    $region25: #{actor_q_forward.1} parent=1 // pred_fallthru
      _
    // Predicated region
    $region26: #{actor_q_forward.1} parent=1 // pred_check
      _
    $region27: #{actor_q_forward.1} parent=1 // pred_check_branch
      %68 = sbr.rel (0) target = $region29
    $region28: #{actor_q_forward.1} parent=1 // pred_region
      _
    $region29: #{actor_q_forward.1} parent=1 // pred_fallthru
      _
    // Predicated region
    $region30: #{actor_q_forward.1} parent=1 // pred_check
      _
    $region31: #{actor_q_forward.1} parent=1 // pred_check_branch
      %70 = sbr.rel (0) target = $region33
    $region32: #{actor_q_forward.1} parent=1 // pred_region
      %s72 = ssub.s32 1024, 1024
      %73 = vsyncadd [#allocation8], %s72
      %s74 = sshll.u32 [#allocation9], 4
      %s75 = int_to_ptr.vmem [resolvable:$true] %s74
      %80 = dma.hbm_to_vmem [thread:$0]  %s7, 1024, %s75, [#allocation8], 64, 64, 4
    $region33: #{actor_q_forward.1} parent=1 // pred_fallthru
      _
    // Predicated region
    $region34: #{actor_q_forward.1} parent=1 // pred_check
      _
    $region35: #{actor_q_forward.1} parent=1 // pred_check_branch
      %82 = sbr.rel (0) target = $region37
    $region36: #{actor_q_forward.1} parent=1 // pred_region
      _
    $region37: #{actor_q_forward.1} parent=1 // pred_fallthru
      _
    // Predicated region
    $region38: #{actor_q_forward.1} parent=1 // pred_check
      _
    $region39: #{actor_q_forward.1} parent=1 // pred_check_branch
      %84 = sbr.rel (0) target = $region41
    $region40: #{actor_q_forward.1} parent=1 // pred_region
      %85 = dma.done [#allocation3], 128
    $region41: #{actor_q_forward.1} parent=1 // pred_fallthru
      _
    // Predicated region
    $region42: #{actor_q_forward.1} parent=1 // pred_check
      _
    $region43: #{actor_q_forward.1} parent=1 // pred_check_branch
      %87 = sbr.rel (0) target = $region45
    $region44: #{actor_q_forward.1} parent=1 // pred_region
      %88 = dma.done [#allocation5], 1280
    $region45: #{actor_q_forward.1} parent=1 // pred_fallthru
      _
    // Predicated region
    $region46: #{actor_q_forward.1} parent=1 // pred_check
      _
    $region47: #{actor_q_forward.1} parent=1 // pred_check_branch
      %90 = sbr.rel (0) target = $region49
    $region48: #{actor_q_forward.1} parent=1 // pred_region
      %91 = dma.done [#allocation5], 4096
    $region49: #{actor_q_forward.1} parent=1 // pred_fallthru
      _
    // Predicated region
    $region50: #{actor_q_forward.1} parent=1 // pred_check
      _
    $region51: #{actor_q_forward.1} parent=1 // pred_check_branch
      %93 = sbr.rel (0) target = $region53
    $region52: #{actor_q_forward.1} parent=1 // pred_region
      %94 = dma.done [#allocation8], 2048
    $region53: #{actor_q_forward.1} parent=1 // pred_fallthru
      _
    // Predicated region
    $region54: #{actor_q_forward.1} parent=1 // pred_check
      _
    $region55: #{actor_q_forward.1} parent=1 // pred_check_branch
      %96 = sbr.rel (0) target = $region57
    $region56: #{actor_q_forward.1} parent=1 // pred_region
      %97 = dma.done [#allocation8], 1024
    $region57: #{actor_q_forward.1} parent=1 // pred_fallthru
      _
    %v99 = vld [vmem:[#allocation2] sm:$0xff]
    %v100 = vld [vmem:[#allocation4] sm:$0xff]
    %v101 = vld [vmem:[#allocation4 + $0x8] sm:$0xff]
    %v102 = vld [vmem:[#allocation4 + $0x10] sm:$0xff]
    %v103 = vld [vmem:[#allocation4 + $0x18] sm:$0xff]
    %v104 = vld [vmem:[#allocation4 + $0x20] sm:$0xff]
    %v105 = vld [vmem:[#allocation4 + $0x28] sm:$0xff]
    %v106 = vld [vmem:[#allocation4 + $0x30] sm:$0xff]
    %v107 = vld [vmem:[#allocation4 + $0x38] sm:$0xff]
    %v108 = vld [vmem:[#allocation4 + $0x40] sm:$0x1]
    %v109 = vld [vmem:[#allocation4 + $0x48] sm:$0x1]
    %v110 = vld [vmem:[%s2] sm:$0x3]
    %v112 = vlaneseq
    %v113 = vshrl.u32 %v112, 7
    %v114 = vsub.s32 0, %v113
    %v115 = vrot.slane %v110, %v114
    %v116 = vlaneseq
    %v117 = vshrl.u32 %v116, 7
    %v118 = vsub.s32 1, %v117
    %v119 = vrot.slane %v110, %v118
    %vm122 = vcmask 269312
    %v124 = vsel %vm122, %v99, 0
    %vm126 = vcmask 1040384
    %v128 = vsel %vm126, %v108, 0
    %v131 = vsel %vm126, %v109, 0
    %133 = vmatprep.subr.mxu0 %v101
    %134 = vmatpush1.msra.mxu0 %v100
    %135 = vmatprep.subr.mxu0 %v103
    %136 = vmatpush1.msra.mxu0 %v102
    %137 = vmatprep.subr.mxu0 %v105
    %138 = vmatpush1.msra.mxu0 %v104
    %139 = vmatprep.subr.mxu0 %v107
    %140 = vmatpush1.msra.mxu0 %v106
    %141 = vmatprep.subr.mxu0 %v131
    %142 = vmatpush1.msra.mxu0 %v128
    %143 = vmatprep.subr.mxu0 0.0
    %144 = vmatpush1.msra.mxu0 0.0
    %145 = vmatprep.subr.mxu0 0.0
    %146 = vmatpush1.msra.mxu0 0.0
    %147 = vmatprep.subr.mxu0 0.0
    %148 = vmatpush1.msra.mxu0 0.0
    %149 = vmatprep.subr.mxu0 0.0
    %150 = vmatpush1.msra.mxu0 0.0
    %151 = vmatprep.subr.mxu0 0.0
    %152 = vmatpush1.msra.mxu0 0.0
    %153 = vmatprep.subr.mxu0 0.0
    %154 = vmatpush1.msra.mxu0 0.0
    %155 = vmatprep.subr.mxu0 0.0
    %156 = vmatpush1.msra.mxu0 0.0
    %157 = vmatprep.subr.mxu0 0.0
    %158 = vmatpush1.msra.mxu0 0.0
    %159 = vmatprep.subr.mxu0 0.0
    %160 = vmatpush1.msra.mxu0 0.0
    %161 = vmatprep.subr.mxu0 0.0
    %162 = vmatpush1.msra.mxu0 0.0
    %163 = vmatprep.subr.mxu0 0.0
    %164 = vmatpush1.msra.mxu0 0.0
    %165 = vmatprep.subr.mxu0 0.0
    %166 = vmatpush1.msra.mxu0 0.0
    %167 = vmatprep.subr.mxu0 0.0
    %168 = vmatpush1.msra.mxu0 0.0
    %169 = vmatprep.subr.mxu0 0.0
    %170 = vmatpush1.msra.mxu0 0.0
    %171 = vmatprep.subr.mxu0 0.0
    %172 = vmatpush1.msra.mxu0 0.0
    %173 = vmatprep.subr.mxu0 0.0
    %174 = vmatpush1.msra.mxu0 0.0
    %175 = vmatprep.subr.mxu0 0.0
    %176 = vmatpush1.msra.mxu0 0.0
    %177 = vmatprep.subr.mxu0 0.0
    %178 = vmatpush1.msra.mxu0 0.0
    %179 = vmatprep.subr.mxu0 0.0
    %180 = vmatpush1.msra.mxu0 0.0
    %181 = vmatprep.subr.mxu0 0.0
    %182 = vmatpush1.msra.mxu0 0.0
    %183 = vmatprep.subr.mxu0 0.0
    %184 = vmatpush1.msra.mxu0 0.0
    %185 = vmatprep.subr.mxu0 0.0
    %186 = vmatpush1.msra.mxu0 0.0
    %187 = vmatprep.subr.mxu0 0.0
    %188 = vmatpush1.msra.mxu0 0.0
    %189 = vmatprep.subr.mxu0 0.0
    %190 = vmatpush1.msra.mxu0 0.0
    %191 = vmatprep.subr.mxu0 0.0
    %192 = vmatpush1.msra.mxu0 0.0
    %193 = vmatprep.subr.mxu0 0.0
    %194 = vmatpush1.msra.mxu0 0.0
    %195 = vmatprep.subr.mxu0 0.0
    %196 = vmatpush1.msra.mxu0 0.0
    %197 = vmatprep.mubr.f32.mxu0 0.0
    %198 = vmatmul.mubr.f32.gmra.mrb[0].mxu0 %v124
    %v199 = vpop.f32.mrb[0].mxu0
    %v200 = vadd.f32 %v115, %v199
    %v201 = vpop.f32.mrb[0].mxu0
    %v202 = vadd.f32 %v119, %v201
    %203 = vdwg.mxu0
    %v204 = vmax.f32 %v200, 0.0
    %v205 = vmax.f32 %v202, 0.0
    %v206 = vpack.c.bf16 %v204, %v204
    %v207 = vpack.c.bf16 %v205, %v205
    %v208 = vld [vmem:[#allocation6] sm:$0xff]
    %v209 = vld [vmem:[#allocation6 + $0x8] sm:$0xff]
    %v210 = vld [vmem:[#allocation6 + $0x10] sm:$0xff]
    %v211 = vld [vmem:[#allocation6 + $0x18] sm:$0xff]
    %v212 = vld [vmem:[#allocation6 + $0x20] sm:$0xff]
    %v213 = vld [vmem:[#allocation6 + $0x28] sm:$0xff]
    %v214 = vld [vmem:[#allocation6 + $0x30] sm:$0xff]
    %v215 = vld [vmem:[#allocation6 + $0x38] sm:$0xff]
    %v216 = vld [vmem:[#allocation6 + $0x40] sm:$0xff]
    %v217 = vld [vmem:[#allocation6 + $0x48] sm:$0xff]
    %v218 = vld [vmem:[#allocation6 + $0x50] sm:$0xff]
    %v219 = vld [vmem:[#allocation6 + $0x58] sm:$0xff]
    %v220 = vld [vmem:[#allocation6 + $0x60] sm:$0xff]
    %v221 = vld [vmem:[#allocation6 + $0x68] sm:$0xff]
    %v222 = vld [vmem:[#allocation6 + $0x70] sm:$0xff]
    %v223 = vld [vmem:[#allocation6 + $0x78] sm:$0xff]
    %v224 = vld [vmem:[#allocation6 + $0x80] sm:$0xff]
    %v225 = vld [vmem:[#allocation6 + $0x88] sm:$0xff]
    %v226 = vld [vmem:[#allocation6 + $0x90] sm:$0xff]
    %v227 = vld [vmem:[#allocation6 + $0x98] sm:$0xff]
    %v228 = vld [vmem:[#allocation6 + $0xa0] sm:$0xff]
    %v229 = vld [vmem:[#allocation6 + $0xa8] sm:$0xff]
    %v230 = vld [vmem:[#allocation6 + $0xb0] sm:$0xff]
    %v231 = vld [vmem:[#allocation6 + $0xb8] sm:$0xff]
    %v232 = vld [vmem:[#allocation6 + $0xc0] sm:$0xff]
    %v233 = vld [vmem:[#allocation6 + $0xc8] sm:$0xff]
    %v234 = vld [vmem:[#allocation6 + $0xd0] sm:$0xff]
    %v235 = vld [vmem:[#allocation6 + $0xd8] sm:$0xff]
    %v236 = vld [vmem:[#allocation6 + $0xe0] sm:$0xff]
    %v237 = vld [vmem:[#allocation6 + $0xe8] sm:$0xff]
    %v238 = vld [vmem:[#allocation6 + $0xf0] sm:$0xff]
    %v239 = vld [vmem:[#allocation6 + $0xf8] sm:$0xff]
    %v240 = vld [vmem:[%s4] sm:$0x3]
    %v242 = vlaneseq
    %v243 = vshrl.u32 %v242, 7
    %v244 = vsub.s32 0, %v243
    %v245 = vrot.slane %v240, %v244
    %v246 = vlaneseq
    %v247 = vshrl.u32 %v246, 7
    %v248 = vsub.s32 1, %v247
    %v249 = vrot.slane %v240, %v248
    %v284 = vunpack.c.l.b16 %v208
    %v285 = vunpack.c.h.b16 %v208
    %v286 = vunpack.c.l.b16 %v209
    %v287 = vunpack.c.h.b16 %v209
    %v288 = vunpack.c.l.b16 %v210
    %v289 = vunpack.c.h.b16 %v210
    %v290 = vunpack.c.l.b16 %v211
    %v291 = vunpack.c.h.b16 %v211
    %v292 = vunpack.c.l.b16 %v212
    %v293 = vunpack.c.h.b16 %v212
    %v294 = vunpack.c.l.b16 %v213
    %v295 = vunpack.c.h.b16 %v213
    %v296 = vunpack.c.l.b16 %v214
    %v297 = vunpack.c.h.b16 %v214
    %v298 = vunpack.c.l.b16 %v215
    %v299 = vunpack.c.h.b16 %v215
    %v300 = vunpack.c.l.b16 %v216
    %v301 = vunpack.c.h.b16 %v216
    %v302 = vunpack.c.l.b16 %v217
    %v303 = vunpack.c.h.b16 %v217
    %v304 = vunpack.c.l.b16 %v218
    %v305 = vunpack.c.h.b16 %v218
    %v306 = vunpack.c.l.b16 %v219
    %v307 = vunpack.c.h.b16 %v219
    %v308 = vunpack.c.l.b16 %v220
    %v309 = vunpack.c.h.b16 %v220
    %v310 = vunpack.c.l.b16 %v221
    %v311 = vunpack.c.h.b16 %v221
    %v312 = vunpack.c.l.b16 %v222
    %v313 = vunpack.c.h.b16 %v222
    %v314 = vunpack.c.l.b16 %v223
    %v315 = vunpack.c.h.b16 %v223
    %v316 = vunpack.c.l.b16 %v224
    %v317 = vunpack.c.h.b16 %v224
    %v318 = vunpack.c.l.b16 %v225
    %v319 = vunpack.c.h.b16 %v225
    %v320 = vunpack.c.l.b16 %v226
    %v321 = vunpack.c.h.b16 %v226
    %v322 = vunpack.c.l.b16 %v227
    %v323 = vunpack.c.h.b16 %v227
    %v324 = vunpack.c.l.b16 %v228
    %v325 = vunpack.c.h.b16 %v228
    %v326 = vunpack.c.l.b16 %v229
    %v327 = vunpack.c.h.b16 %v229
    %v328 = vunpack.c.l.b16 %v230
    %v329 = vunpack.c.h.b16 %v230
    %v330 = vunpack.c.l.b16 %v231
    %v331 = vunpack.c.h.b16 %v231
    %v332 = vunpack.c.l.b16 %v232
    %v333 = vunpack.c.h.b16 %v232
    %v334 = vunpack.c.l.b16 %v233
    %v335 = vunpack.c.h.b16 %v233
    %v336 = vunpack.c.l.b16 %v234
    %v337 = vunpack.c.h.b16 %v234
    %v338 = vunpack.c.l.b16 %v235
    %v339 = vunpack.c.h.b16 %v235
    %v340 = vunpack.c.l.b16 %v236
    %v341 = vunpack.c.h.b16 %v236
    %v342 = vunpack.c.l.b16 %v237
    %v343 = vunpack.c.h.b16 %v237
    %v344 = vunpack.c.l.b16 %v238
    %v345 = vunpack.c.h.b16 %v238
    %v346 = vunpack.c.l.b16 %v239
    %v347 = vunpack.c.h.b16 %v239
    %v348 = vpack.c.b16 %v286, %v284
    %v349 = vpack.c.b16 %v287, %v285
    %v350 = vpack.c.b16 %v290, %v288
    %v351 = vpack.c.b16 %v291, %v289
    %v352 = vpack.c.b16 %v294, %v292
    %v353 = vpack.c.b16 %v295, %v293
    %v354 = vpack.c.b16 %v298, %v296
    %v355 = vpack.c.b16 %v299, %v297
    %v356 = vpack.c.b16 %v302, %v300
    %v357 = vpack.c.b16 %v303, %v301
    %v358 = vpack.c.b16 %v306, %v304
    %v359 = vpack.c.b16 %v307, %v305
    %v360 = vpack.c.b16 %v310, %v308
    %v361 = vpack.c.b16 %v311, %v309
    %v362 = vpack.c.b16 %v314, %v312
    %v363 = vpack.c.b16 %v315, %v313
    %v364 = vpack.c.b16 %v318, %v316
    %v365 = vpack.c.b16 %v319, %v317
    %v366 = vpack.c.b16 %v322, %v320
    %v367 = vpack.c.b16 %v323, %v321
    %v368 = vpack.c.b16 %v326, %v324
    %v369 = vpack.c.b16 %v327, %v325
    %v370 = vpack.c.b16 %v330, %v328
    %v371 = vpack.c.b16 %v331, %v329
    %v372 = vpack.c.b16 %v334, %v332
    %v373 = vpack.c.b16 %v335, %v333
    %v374 = vpack.c.b16 %v338, %v336
    %v375 = vpack.c.b16 %v339, %v337
    %v376 = vpack.c.b16 %v342, %v340
    %v377 = vpack.c.b16 %v343, %v341
    %v378 = vpack.c.b16 %v346, %v344
    %v379 = vpack.c.b16 %v347, %v345
    %412 = vmatprep.subr.bf16.mxu0 %v349
    %413 = vmatpush1.bf16.msra.mxu0 %v348
    %414 = vmatprep.subr.bf16.mxu0 %v351
    %415 = vmatpush1.bf16.msra.mxu0 %v350
    %416 = vmatprep.subr.bf16.mxu0 %v353
    %417 = vmatpush1.bf16.msra.mxu0 %v352
    %418 = vmatprep.subr.bf16.mxu0 %v355
    %419 = vmatpush1.bf16.msra.mxu0 %v354
    %420 = vmatprep.subr.bf16.mxu0 %v357
    %421 = vmatpush1.bf16.msra.mxu0 %v356
    %422 = vmatprep.subr.bf16.mxu0 %v359
    %423 = vmatpush1.bf16.msra.mxu0 %v358
    %424 = vmatprep.subr.bf16.mxu0 %v361
    %425 = vmatpush1.bf16.msra.mxu0 %v360
    %426 = vmatprep.subr.bf16.mxu0 %v363
    %427 = vmatpush1.bf16.msra.mxu0 %v362
    %428 = vmatprep.subr.bf16.mxu0 %v365
    %429 = vmatpush1.bf16.msra.mxu0 %v364
    %430 = vmatprep.subr.bf16.mxu0 %v367
    %431 = vmatpush1.bf16.msra.mxu0 %v366
    %432 = vmatprep.subr.bf16.mxu0 %v369
    %433 = vmatpush1.bf16.msra.mxu0 %v368
    %434 = vmatprep.subr.bf16.mxu0 %v371
    %435 = vmatpush1.bf16.msra.mxu0 %v370
    %436 = vmatprep.subr.bf16.mxu0 %v373
    %437 = vmatpush1.bf16.msra.mxu0 %v372
    %438 = vmatprep.subr.bf16.mxu0 %v375
    %439 = vmatpush1.bf16.msra.mxu0 %v374
    %440 = vmatprep.subr.bf16.mxu0 %v377
    %441 = vmatpush1.bf16.msra.mxu0 %v376
    %442 = vmatprep.subr.bf16.mxu0 %v379
    %443 = vmatpush1.bf16.msra.mxu0 %v378
    %444 = vmatprep.mubr.bf16.mxu0 %v207
    %445 = vmatmul.mubr.bf16.gmra.mrb[0].mxu0 %v206
    %v446 = vpop.f32.mrb[0].mxu0
    %v447 = vadd.f32 %v245, %v446
    %v448 = vpop.f32.mrb[0].mxu0
    %v449 = vadd.f32 %v249, %v448
    %v450 = vpop.f32.mrb[0].mxu0
    %v451 = vpop.f32.mrb[0].mxu0
    %452 = vdwg.mxu0
    %v453 = vmax.f32 %v447, 0.0
    %v454 = vmax.f32 %v449, 0.0
    %v455 = vpack.c.bf16 %v453, %v453
    %v456 = vpack.c.bf16 %v454, %v454
    %v457 = vld [vmem:[#allocation7] sm:$0xf]
    %v458 = vld [vmem:[#allocation7 + $0x4] sm:$0xf]
    %v459 = vld [vmem:[#allocation7 + $0x8] sm:$0xf]
    %v460 = vld [vmem:[#allocation7 + $0xc] sm:$0xf]
    %v461 = vld [vmem:[#allocation7 + $0x10] sm:$0xf]
    %v462 = vld [vmem:[#allocation7 + $0x14] sm:$0xf]
    %v463 = vld [vmem:[#allocation7 + $0x18] sm:$0xf]
    %v464 = vld [vmem:[#allocation7 + $0x1c] sm:$0xf]
    %v465 = vld [vmem:[#allocation7 + $0x20] sm:$0xf]
    %v466 = vld [vmem:[#allocation7 + $0x24] sm:$0xf]
    %v467 = vld [vmem:[#allocation7 + $0x28] sm:$0xf]
    %v468 = vld [vmem:[#allocation7 + $0x2c] sm:$0xf]
    %v469 = vld [vmem:[#allocation7 + $0x30] sm:$0xf]
    %v470 = vld [vmem:[#allocation7 + $0x34] sm:$0xf]
    %v471 = vld [vmem:[#allocation7 + $0x38] sm:$0xf]
    %v472 = vld [vmem:[#allocation7 + $0x3c] sm:$0xf]
    %v473 = vld [vmem:[#allocation7 + $0x40] sm:$0xf]
    %v474 = vld [vmem:[#allocation7 + $0x44] sm:$0xf]
    %v475 = vld [vmem:[#allocation7 + $0x48] sm:$0xf]
    %v476 = vld [vmem:[#allocation7 + $0x4c] sm:$0xf]
    %v477 = vld [vmem:[#allocation7 + $0x50] sm:$0xf]
    %v478 = vld [vmem:[#allocation7 + $0x54] sm:$0xf]
    %v479 = vld [vmem:[#allocation7 + $0x58] sm:$0xf]
    %v480 = vld [vmem:[#allocation7 + $0x5c] sm:$0xf]
    %v481 = vld [vmem:[#allocation7 + $0x60] sm:$0xf]
    %v482 = vld [vmem:[#allocation7 + $0x64] sm:$0xf]
    %v483 = vld [vmem:[#allocation7 + $0x68] sm:$0xf]
    %v484 = vld [vmem:[#allocation7 + $0x6c] sm:$0xf]
    %v485 = vld [vmem:[#allocation7 + $0x70] sm:$0xf]
    %v486 = vld [vmem:[#allocation7 + $0x74] sm:$0xf]
    %v487 = vld [vmem:[#allocation7 + $0x78] sm:$0xf]
    %v488 = vld [vmem:[#allocation7 + $0x7c] sm:$0xf]
    %v489 = vld [vmem:[%s6] sm:$0x1]
    %v491 = vlaneseq
    %v492 = vshrl.u32 %v491, 7
    %v493 = vsub.s32 0, %v492
    %v494 = vrot.slane %v489, %v493
    %v528 = vunpack.c.l.b16 %v457
    %v529 = vunpack.c.l.b16 %v458
    %v530 = vunpack.c.l.b16 %v459
    %v531 = vunpack.c.l.b16 %v460
    %v532 = vunpack.c.l.b16 %v461
    %v533 = vunpack.c.l.b16 %v462
    %v534 = vunpack.c.l.b16 %v463
    %v535 = vunpack.c.l.b16 %v464
    %v536 = vunpack.c.l.b16 %v465
    %v537 = vunpack.c.l.b16 %v466
    %v538 = vunpack.c.l.b16 %v467
    %v539 = vunpack.c.l.b16 %v468
    %v540 = vunpack.c.l.b16 %v469
    %v541 = vunpack.c.l.b16 %v470
    %v542 = vunpack.c.l.b16 %v471
    %v543 = vunpack.c.l.b16 %v472
    %v544 = vunpack.c.l.b16 %v473
    %v545 = vunpack.c.l.b16 %v474
    %v546 = vunpack.c.l.b16 %v475
    %v547 = vunpack.c.l.b16 %v476
    %v548 = vunpack.c.l.b16 %v477
    %v549 = vunpack.c.l.b16 %v478
    %v550 = vunpack.c.l.b16 %v479
    %v551 = vunpack.c.l.b16 %v480
    %v552 = vunpack.c.l.b16 %v481
    %v553 = vunpack.c.l.b16 %v482
    %v554 = vunpack.c.l.b16 %v483
    %v555 = vunpack.c.l.b16 %v484
    %v556 = vunpack.c.l.b16 %v485
    %v557 = vunpack.c.l.b16 %v486
    %v558 = vunpack.c.l.b16 %v487
    %v559 = vunpack.c.l.b16 %v488
    %v560 = vpack.c.b16 %v529, %v528
    %v561 = vpack.c.b16 %v531, %v530
    %v562 = vpack.c.b16 %v533, %v532
    %v563 = vpack.c.b16 %v535, %v534
    %v564 = vpack.c.b16 %v537, %v536
    %v565 = vpack.c.b16 %v539, %v538
    %v566 = vpack.c.b16 %v541, %v540
    %v567 = vpack.c.b16 %v543, %v542
    %v568 = vpack.c.b16 %v545, %v544
    %v569 = vpack.c.b16 %v547, %v546
    %v570 = vpack.c.b16 %v549, %v548
    %v571 = vpack.c.b16 %v551, %v550
    %v572 = vpack.c.b16 %v553, %v552
    %v573 = vpack.c.b16 %v555, %v554
    %v574 = vpack.c.b16 %v557, %v556
    %v575 = vpack.c.b16 %v559, %v558
    %592 = vmatprep.subr.bf16.mxu0 0
    %593 = vmatpush1.bf16.msra.mxu0 %v560
    %594 = vmatprep.subr.bf16.mxu0 0
    %595 = vmatpush1.bf16.msra.mxu0 %v561
    %596 = vmatprep.subr.bf16.mxu0 0
    %597 = vmatpush1.bf16.msra.mxu0 %v562
    %598 = vmatprep.subr.bf16.mxu0 0
    %599 = vmatpush1.bf16.msra.mxu0 %v563
    %600 = vmatprep.subr.bf16.mxu0 0
    %601 = vmatpush1.bf16.msra.mxu0 %v564
    %602 = vmatprep.subr.bf16.mxu0 0
    %603 = vmatpush1.bf16.msra.mxu0 %v565
    %604 = vmatprep.subr.bf16.mxu0 0
    %605 = vmatpush1.bf16.msra.mxu0 %v566
    %606 = vmatprep.subr.bf16.mxu0 0
    %607 = vmatpush1.bf16.msra.mxu0 %v567
    %608 = vmatprep.subr.bf16.mxu0 0
    %609 = vmatpush1.bf16.msra.mxu0 %v568
    %610 = vmatprep.subr.bf16.mxu0 0
    %611 = vmatpush1.bf16.msra.mxu0 %v569
    %612 = vmatprep.subr.bf16.mxu0 0
    %613 = vmatpush1.bf16.msra.mxu0 %v570
    %614 = vmatprep.subr.bf16.mxu0 0
    %615 = vmatpush1.bf16.msra.mxu0 %v571
    %616 = vmatprep.subr.bf16.mxu0 0
    %617 = vmatpush1.bf16.msra.mxu0 %v572
    %618 = vmatprep.subr.bf16.mxu0 0
    %619 = vmatpush1.bf16.msra.mxu0 %v573
    %620 = vmatprep.subr.bf16.mxu0 0
    %621 = vmatpush1.bf16.msra.mxu0 %v574
    %622 = vmatprep.subr.bf16.mxu0 0
    %623 = vmatpush1.bf16.msra.mxu0 %v575
    %624 = vmatprep.mubr.bf16.mxu0 %v456
    %625 = vmatmul.mubr.bf16.gmra.mrb[0].mxu0 %v455
    %v626 = vpop.f32.mrb[0].mxu0
    %v627 = vadd.f32 %v494, %v626
    %v628 = vpop.f32.mrb[0].mxu0
    %v629 = vpop.f32.mrb[0].mxu0
    %v630 = vpop.f32.mrb[0].mxu0
    %631 = vdwg.mxu0
    %v632 = vmax.f32 %v627, 0.0
    %v633 = vpack.c.bf16 %v632, %v632
    %v634 = vld [vmem:[#allocation9] sm:$0xf]
    %v635 = vld [vmem:[#allocation9 + $0x4] sm:$0xf]
    %v636 = vld [vmem:[#allocation9 + $0x8] sm:$0xf]
    %v637 = vld [vmem:[#allocation9 + $0xc] sm:$0xf]
    %v638 = vld [vmem:[#allocation9 + $0x10] sm:$0xf]
    %v639 = vld [vmem:[#allocation9 + $0x14] sm:$0xf]
    %v640 = vld [vmem:[#allocation9 + $0x18] sm:$0xf]
    %v641 = vld [vmem:[#allocation9 + $0x1c] sm:$0xf]
    %v642 = vld [vmem:[#allocation9 + $0x20] sm:$0xf]
    %v643 = vld [vmem:[#allocation9 + $0x24] sm:$0xf]
    %v644 = vld [vmem:[#allocation9 + $0x28] sm:$0xf]
    %v645 = vld [vmem:[#allocation9 + $0x2c] sm:$0xf]
    %v646 = vld [vmem:[#allocation9 + $0x30] sm:$0xf]
    %v647 = vld [vmem:[#allocation9 + $0x34] sm:$0xf]
    %v648 = vld [vmem:[#allocation9 + $0x38] sm:$0xf]
    %v649 = vld [vmem:[#allocation9 + $0x3c] sm:$0xf]
    %v650 = vld [vmem:[%s8] sm:$0x1]
    %v652 = vlaneseq
    %v653 = vshrl.u32 %v652, 7
    %v654 = vsub.s32 0, %v653
    %v655 = vrot.slane %v650, %v654
    %v673 = vunpack.c.l.b16 %v634
    %v674 = vunpack.c.l.b16 %v635
    %v675 = vunpack.c.l.b16 %v636
    %v676 = vunpack.c.l.b16 %v637
    %v677 = vunpack.c.l.b16 %v638
    %v678 = vunpack.c.l.b16 %v639
    %v679 = vunpack.c.l.b16 %v640
    %v680 = vunpack.c.l.b16 %v641
    %v681 = vunpack.c.l.b16 %v642
    %v682 = vunpack.c.l.b16 %v643
    %v683 = vunpack.c.l.b16 %v644
    %v684 = vunpack.c.l.b16 %v645
    %v685 = vunpack.c.l.b16 %v646
    %v686 = vunpack.c.l.b16 %v647
    %v687 = vunpack.c.l.b16 %v648
    %v688 = vunpack.c.l.b16 %v649
    %v689 = vpack.c.b16 %v674, %v673
    %v690 = vpack.c.b16 %v676, %v675
    %v691 = vpack.c.b16 %v678, %v677
    %v692 = vpack.c.b16 %v680, %v679
    %v693 = vpack.c.b16 %v682, %v681
    %v694 = vpack.c.b16 %v684, %v683
    %v695 = vpack.c.b16 %v686, %v685
    %v696 = vpack.c.b16 %v688, %v687
    %705 = vmatprep.subr.bf16.mxu0 0
    %706 = vmatpush1.bf16.msra.mxu0 %v689
    %707 = vmatprep.subr.bf16.mxu0 0
    %708 = vmatpush1.bf16.msra.mxu0 %v690
    %709 = vmatprep.subr.bf16.mxu0 0
    %710 = vmatpush1.bf16.msra.mxu0 %v691
    %711 = vmatprep.subr.bf16.mxu0 0
    %712 = vmatpush1.bf16.msra.mxu0 %v692
    %713 = vmatprep.subr.bf16.mxu0 0
    %714 = vmatpush1.bf16.msra.mxu0 %v693
    %715 = vmatprep.subr.bf16.mxu0 0
    %716 = vmatpush1.bf16.msra.mxu0 %v694
    %717 = vmatprep.subr.bf16.mxu0 0
    %718 = vmatpush1.bf16.msra.mxu0 %v695
    %719 = vmatprep.subr.bf16.mxu0 0
    %720 = vmatpush1.bf16.msra.mxu0 %v696
    %721 = vmatprep.subr.bf16.mxu0 0
    %722 = vmatpush1.bf16.msra.mxu0 0
    %723 = vmatprep.subr.bf16.mxu0 0
    %724 = vmatpush1.bf16.msra.mxu0 0
    %725 = vmatprep.subr.bf16.mxu0 0
    %726 = vmatpush1.bf16.msra.mxu0 0
    %727 = vmatprep.subr.bf16.mxu0 0
    %728 = vmatpush1.bf16.msra.mxu0 0
    %729 = vmatprep.subr.bf16.mxu0 0
    %730 = vmatpush1.bf16.msra.mxu0 0
    %731 = vmatprep.subr.bf16.mxu0 0
    %732 = vmatpush1.bf16.msra.mxu0 0
    %733 = vmatprep.subr.bf16.mxu0 0
    %734 = vmatpush1.bf16.msra.mxu0 0
    %735 = vmatprep.subr.bf16.mxu0 0
    %736 = vmatpush1.bf16.msra.mxu0 0
    %737 = vmatprep.mubr.bf16.mxu0 0
    %738 = vmatmul.mubr.bf16.gmra.mrb[0].mxu0 %v633
    %v739 = vpop.f32.mrb[0].mxu0
    %v740 = vadd.f32 %v655, %v739
    %v741 = vpop.f32.mrb[0].mxu0
    %v742 = vpop.f32.mrb[0].mxu0
    %v743 = vpop.f32.mrb[0].mxu0
    %744 = vdwg.mxu0
    %v745 = vtanh.pop %v740
    %v746 = vpack.c.bf16 %v745, %v745
    %747 = vst [vmem:[%s9] sm:$0xf] %v746
    // Predicated region
    $region58: #{actor_q_forward.1} parent=1 // pred_check
      _
    $region59: #{actor_q_forward.1} parent=1 // pred_check_branch
      %749 = sbr.rel (0) target = $region61
    $region60: #{actor_q_forward.1} parent=1 // pred_region
      _
    $region61: #{actor_q_forward.1} parent=1 // pred_fallthru
      _
    // Predicated region
    $region62: #{actor_q_forward.1} parent=1 // pred_check
      _
    $region63: #{actor_q_forward.1} parent=1 // pred_check_branch
      %751 = sbr.rel (0) target = $region65
    $region64: #{actor_q_forward.1} parent=1 // pred_region
      _
    $region65: #{actor_q_forward.1} parent=1 // pred_fallthru
      _
    %752 = vsyncpa [#allocation3], 1
    %753 = vsyncpa [#allocation5], 1
    %754 = vsyncpa [#allocation8], 1

</llo_original>
